<compile_context>
chip_gen: v7x
topology: tpu7x:2x2x1
jax: 0.10.0
libtpu: 0.0.40
codegen_flags: <defaults>
</compile_context>

<pallas_src>
import jax
import jax.numpy as jnp
from jax import lax
from jax.experimental import pallas as pl
from jax.experimental.pallas import tpu as pltpu

EPS = 1e-5


def _pick_c_tile(c):
    # Prefer exactly 2 grid steps (even count -> one whole tile per v7x core,
    # >= 2 steps -> v5e/v6e DMA/compute pipelining); tile must be a multiple of 8.
    half = c // 2
    if c % 2 == 0 and half % 8 == 0:
        return half
    for t in (896, 512, 448, 256, 128, 64, 32, 16, 8):
        if c % t == 0:
            return t
    return c


def _pick_row_chunk(c_tile):
    # Channels processed per inner-loop slab (bounds live vreg pressure).
    for ch in (128, 64, 32, 16, 8):
        if c_tile % ch == 0:
            return ch
    return c_tile


def _make_bn_kernel(c_tile, r):
    row_chunk = _pick_row_chunk(c_tile)
    n_chunks = c_tile // row_chunk
    inv_r = 1.0 / float(r)

    def kernel(x_ref, gamma_ref, beta_ref, o_ref):
        # x_ref: (c_tile, r) with r = N*H*W; the full reduction axis stays
        #        in-block, so inv_r is exactly 1/(N*H*W).
        # gamma_ref / beta_ref: (c_tile, 1)
        def body(j, carry):
            r0 = pl.multiple_of(j * row_chunk, row_chunk)
            rows = pl.ds(r0, row_chunk)
            xc = x_ref[rows, :]                                   # (chunk, r)
            mean = jnp.sum(xc, axis=1, keepdims=True) * inv_r     # (chunk, 1)
            d = xc - mean                                         # centered pass
            var = jnp.sum(d * d, axis=1, keepdims=True) * inv_r   # biased var
            a = gamma_ref[rows, :] * lax.rsqrt(var + EPS)         # (chunk, 1)
            o_ref[rows, :] = (d * a + beta_ref[rows, :]).astype(o_ref.dtype)
            return carry

        lax.fori_loop(0, n_chunks, body, 0)

    return kernel


def batchnorm2d_pallas(x_nchw, gamma, beta):
    """Training-mode BatchNorm2d forward. x_nchw: (N, C, H, W) float32."""
    n, c, h, w = x_nchw.shape
    r = n * h * w

    # NCHW -> (C, N*H*W). For N == 1 this is a free reshape (no transpose).
    # TODO(synk): for N > 1 this materializes a real HBM transpose on both
    # sides; prefer an NHWC-producing caller / fusing the affine upstream.
    if n == 1:
        x_cr = x_nchw.reshape(c, r)
    else:
        x_cr = jnp.moveaxis(x_nchw, 1, 0).reshape(c, r)
    gamma2d = gamma.reshape(c, 1).astype(jnp.float32)
    beta2d = beta.reshape(c, 1).astype(jnp.float32)

    c_tile = _pick_c_tile(c)
    kernel = _make_bn_kernel(c_tile, r)

    out_cr = pl.pallas_call(
        kernel,
        out_shape=jax.ShapeDtypeStruct((c, r), x_cr.dtype),
        grid=(c // c_tile,),
        in_specs=[
            pl.BlockSpec((c_tile, r), lambda i: (i, 0)),
            pl.BlockSpec((c_tile, 1), lambda i: (i, 0)),
            pl.BlockSpec((c_tile, 1), lambda i: (i, 0)),
        ],
        out_specs=pl.BlockSpec((c_tile, r), lambda i: (i, 0)),
        compiler_params=pltpu.CompilerParams(
            dimension_semantics=("parallel",)
        ),
        cost_estimate=pl.CostEstimate(
            flops=7 * c * r,
            transcendentals=c,
            bytes_accessed=2 * c * r * 4,
        ),
    )(x_cr, gamma2d, beta2d)

    if n == 1:
        return out_cr.reshape(n, c, h, w)
    return jnp.moveaxis(out_cr.reshape(c, n, h, w), 0, 1)


def batchnorm2d_ref(x_nchw, gamma, beta):
    mean = jnp.mean(x_nchw, axis=(0, 2, 3), keepdims=True)
    var = jnp.mean((x_nchw - mean) ** 2, axis=(0, 2, 3), keepdims=True)
    g = gamma.reshape(1, -1, 1, 1)
    b = beta.reshape(1, -1, 1, 1)
    return (x_nchw - mean) * lax.rsqrt(var + EPS) * g + b


if __name__ == "__main__":
    key = jax.random.PRNGKey(0)
    kx, kg, kb = jax.random.split(key, 3)

    N, C, H, W = 1, 1792, 7, 7  # shape implied by the module's forward
    x = jax.random.normal(kx, (N, C, H, W), dtype=jnp.float32)

    # BatchNorm2d(1792, affine=True): weight=1, bias=0 at init; perturb so the
    # affine path is exercised non-trivially.
    gamma = jnp.ones((C,), jnp.float32) + 0.1 * jax.random.normal(kg, (C,), jnp.float32)
    beta = 0.1 * jax.random.normal(kb, (C,), jnp.float32)

    # TODO(synk): running_mean/running_var momentum buffer updates (stateful
    # side effect of track_running_stats) are not materialized; forward output
    # does not depend on them in training mode.
    out = batchnorm2d_pallas(x, gamma, beta)
    out = jax.block_until_ready(out)

    ref = batchnorm2d_ref(x, gamma, beta)
    assert out.shape == (N, C, H, W)
    assert jnp.max(jnp.abs(out - ref)) < 1e-4

    print("KERNEL_OK")
</pallas_src>

<mosaic_0001>
module attributes {stable_mosaic.version = 11 : i64} {
  func.func @kernel(%arg0: i32, %arg1: memref<896x49xf32, #tpu.memory_space<vmem>>, %arg2: memref<896x1xf32, #tpu.memory_space<vmem>>, %arg3: memref<896x1xf32, #tpu.memory_space<vmem>>, %arg4: memref<896x49xf32, #tpu.memory_space<vmem>>) attributes {dimension_semantics = [#tpu.dimension_semantics<parallel>], iteration_bounds = array<i64: 2>, scalar_prefetch = 0 : i64, scratch_operands = 0 : i64, tpu.core_type = #tpu.core_type<tc>, window_params = [{transform_indices = @transform_0, window_bounds = array<i64: 896, 49>}, {transform_indices = @transform_1, window_bounds = array<i64: 896, 1>}, {transform_indices = @transform_2, window_bounds = array<i64: 896, 1>}, {transform_indices = @transform_3, window_bounds = array<i64: 896, 49>}]} {
    %c0_i32 = arith.constant 0 : i32
    %c7_i32 = arith.constant 7 : i32
    %0 = arith.addi %c0_i32, %c7_i32 : i32
    %c1_i32 = arith.constant 1 : i32
    scf.for %arg5 = %c0_i32 to %0 step %c1_i32  : i32 {
      %c128_i32 = arith.constant 128 : i32
      %1 = arith.muli %arg5, %c128_i32 : i32
      %2 = tpu.assume_multiple %1, 128 : i32
      %3 = arith.index_cast %2 : i32 to index
      %c0 = arith.constant 0 : index
      %4 = vector.load %arg1[%3, %c0] : memref<896x49xf32, #tpu.memory_space<vmem>>, vector<128x49xf32>
      %cst = arith.constant dense<0.000000e+00> : vector<128xf32>
      %5 = vector.multi_reduction <add>, %4, %cst [1] : vector<128x49xf32> to vector<128xf32>
      %6 = vector.shape_cast %5 : vector<128xf32> to vector<128x1xf32>
      %cst_1 = arith.constant 0.0204081628 : f32
      %7 = vector.broadcast %cst_1 : f32 to vector<128x1xf32>
      %8 = arith.mulf %6, %7 : vector<128x1xf32>
      %9 = vector.broadcast %8 : vector<128x1xf32> to vector<128x49xf32>
      %10 = arith.subf %4, %9 : vector<128x49xf32>
      %11 = arith.mulf %10, %10 : vector<128x49xf32>
      %cst_2 = arith.constant dense<0.000000e+00> : vector<128xf32>
      %12 = vector.multi_reduction <add>, %11, %cst_2 [1] : vector<128x49xf32> to vector<128xf32>
      %13 = vector.shape_cast %12 : vector<128xf32> to vector<128x1xf32>
      %cst_3 = arith.constant 0.0204081628 : f32
      %14 = vector.broadcast %cst_3 : f32 to vector<128x1xf32>
      %15 = arith.mulf %13, %14 : vector<128x1xf32>
      %16 = arith.index_cast %2 : i32 to index
      %c0_4 = arith.constant 0 : index
      %17 = vector.load %arg2[%16, %c0_4] : memref<896x1xf32, #tpu.memory_space<vmem>>, vector<128x1xf32>
      %cst_5 = arith.constant 9.99999974E-6 : f32
      %18 = vector.broadcast %cst_5 : f32 to vector<128x1xf32>
      %19 = arith.addf %15, %18 : vector<128x1xf32>
      %20 = math.rsqrt %19 : vector<128x1xf32>
      %21 = arith.mulf %17, %20 : vector<128x1xf32>
      %22 = vector.broadcast %21 : vector<128x1xf32> to vector<128x49xf32>
      %23 = arith.mulf %10, %22 : vector<128x49xf32>
      %24 = arith.index_cast %2 : i32 to index
      %c0_6 = arith.constant 0 : index
      %25 = vector.load %arg3[%24, %c0_6] : memref<896x1xf32, #tpu.memory_space<vmem>>, vector<128x1xf32>
      %26 = vector.broadcast %25 : vector<128x1xf32> to vector<128x49xf32>
      %27 = arith.addf %23, %26 : vector<128x49xf32>
      %28 = arith.index_cast %2 : i32 to index
      %c0_7 = arith.constant 0 : index
      %29 = vector.load %arg4[%28, %c0_7] : memref<896x49xf32, #tpu.memory_space<vmem>>, vector<128x49xf32>
      tpu.vector_store %arg4[%28, %c0_7], %27 {strides = array<i32>} : memref<896x49xf32, #tpu.memory_space<vmem>>, vector<128x49xf32>,
    }
    %c7_i32_0 = arith.constant 7 : i32
    return
  }
  func.func @transform_0(%arg0: i32) -> (i32, i32) {
    %c0_i32 = arith.constant 0 : i32
    %c0_i32_0 = arith.constant 0 : i32
    return %arg0, %c0_i32 : i32, i32
  }
  func.func @transform_1(%arg0: i32) -> (i32, i32) {
    %c0_i32 = arith.constant 0 : i32
    %c0_i32_0 = arith.constant 0 : i32
    return %arg0, %c0_i32 : i32, i32
  }
  func.func @transform_2(%arg0: i32) -> (i32, i32) {
    %c0_i32 = arith.constant 0 : i32
    %c0_i32_0 = arith.constant 0 : i32
    return %arg0, %c0_i32 : i32, i32
  }
  func.func @transform_3(%arg0: i32) -> (i32, i32) {
    %c0_i32 = arith.constant 0 : i32
    %c0_i32_0 = arith.constant 0 : i32
    return %arg0, %c0_i32 : i32, i32
  }
}

</mosaic_0001>

<llo_original>
// kernel: tpu_custom_call.1
$region0: #{tpu_custom_call.1}
  #allocation0 [shape = 'u32[]', space=smem, size = 0x4, offset = 0x4, fixed_abs, tag = 'smem constant byte address 0x4 - core index']
  #allocation1 [shape = 'u32[144,128]{1,0:T(1,128)}', space=vmem, size = 0x12000, scoped, tag = 'internal scratch']
  %s0 = inlined_call_operand.vmem [shape: f32[1792,49], index: 0, kind: input, shape index: {}]
  %s1 = inlined_call_operand.vmem [shape: f32[1792,1], index: 1, kind: input, shape index: {}]
  %s2 = inlined_call_operand.vmem [shape: f32[1792,1], index: 2, kind: input, shape index: {}]
  %s3 = inlined_call_operand.vmem [shape: f32[1792,49], index: 3, kind: output, shape index: {}]
  %s4 = sld [smem:[#allocation0]]
  $region52: #{tpu_custom_call.1} parent=0
    _
  %s6 = ssub.s32 1, %s4
  %s7 = scalar_select 0, %s6, %s4
  loop: start=0, step=1, limit=4
  $region2: #{tpu_custom_call.1} parent=0 // loop_pre_header
    _
  $region3: #{tpu_custom_call.1} parent=0 // loop_header
    %s9 = sphi 0, %s13
    %p10 = scmp.ge.s32.totalorder %s9, 4
    %s19 = sphi 0, %s21
    %s22 = sphi 0, %s19
    %s23 = sphi 0, %s22
    %s39 = sphi 0, %s23
    %s45 = sphi 0, %s47
    %s48 = sphi 0, %s45
    %s49 = sphi 0, %s48
    %s65 = sphi 0, %s49
    %s71 = sphi 0, %s73
    %s74 = sphi 0, %s71
    %s75 = sphi 0, %s74
    %s91 = sphi 0, %s75
    %s97 = sphi 0, %s99
    %s100 = sphi 0, %s97
    %s101 = sphi 0, %s100
    %s117 = sphi 0, %s101
  $region4: #{tpu_custom_call.1} parent=0 // loop_header_branch
    %12 = sbr.rel (%p10) target = $region8
  $region5: #{tpu_custom_call.1} parent=0 // loop_body
    %s14 = ssub.s32 %s9, 1
    %s15 = ssub.s32 %s9, 2
    %s16 = sadd.s32 %s9, 1
    %s17 = ssub.s32 %s9, %s16
    %p18 = scmp.eq.s32.totalorder %s17, 0
    %s20 = sadd.s32 %s19, 1
    %s21 = scalar_select %p18, %s19, %s20
    %p24 = pneg %p18
    %p25 = scmp.eq.s32.totalorder %s9, 1
    %p26 = por %p24, %p25
    %p27 = scmp.ne.s32.totalorder %s19, %s22
    %p28 = scmp.eq.s32.totalorder %s9, 0
    %p29 = por %p27, %p28
    %p30 = scmp.ne.s32.totalorder %s19, %s22
    %p31 = scmp.eq.s32.totalorder %s14, 1
    %p32 = por %p30, %p31
    %p33 = scmp.ne.s32.totalorder %s22, %s23
    %p34 = scmp.eq.s32.totalorder %s14, 0
    %p35 = por %p33, %p34
    %p36 = scmp.ne.s32.totalorder %s22, %s23
    %p37 = scmp.eq.s32.totalorder %s15, 1
    %p38 = por %p36, %p37
    %p40 = scmp.ne.s32.totalorder %s23, %s39
    %p41 = scmp.eq.s32.totalorder %s15, 0
    %p42 = por %p40, %p41
    %s43 = ssub.s32 %s9, %s16
    %p44 = scmp.eq.s32.totalorder %s43, 0
    %s46 = sadd.s32 %s45, 1
    %s47 = scalar_select %p44, %s45, %s46
    %p50 = pneg %p44
    %p51 = scmp.eq.s32.totalorder %s9, 1
    %p52 = por %p50, %p51
    %p53 = scmp.ne.s32.totalorder %s45, %s48
    %p54 = scmp.eq.s32.totalorder %s9, 0
    %p55 = por %p53, %p54
    %p56 = scmp.ne.s32.totalorder %s45, %s48
    %p57 = scmp.eq.s32.totalorder %s14, 1
    %p58 = por %p56, %p57
    %p59 = scmp.ne.s32.totalorder %s48, %s49
    %p60 = scmp.eq.s32.totalorder %s14, 0
    %p61 = por %p59, %p60
    %p62 = scmp.ne.s32.totalorder %s48, %s49
    %p63 = scmp.eq.s32.totalorder %s15, 1
    %p64 = por %p62, %p63
    %p66 = scmp.ne.s32.totalorder %s49, %s65
    %p67 = scmp.eq.s32.totalorder %s15, 0
    %p68 = por %p66, %p67
    %s69 = ssub.s32 %s9, %s16
    %p70 = scmp.eq.s32.totalorder %s69, 0
    %s72 = sadd.s32 %s71, 1
    %s73 = scalar_select %p70, %s71, %s72
    %p76 = pneg %p70
    %p77 = scmp.eq.s32.totalorder %s9, 1
    %p78 = por %p76, %p77
    %p79 = scmp.ne.s32.totalorder %s71, %s74
    %p80 = scmp.eq.s32.totalorder %s9, 0
    %p81 = por %p79, %p80
    %p82 = scmp.ne.s32.totalorder %s71, %s74
    %p83 = scmp.eq.s32.totalorder %s14, 1
    %p84 = por %p82, %p83
    %p85 = scmp.ne.s32.totalorder %s74, %s75
    %p86 = scmp.eq.s32.totalorder %s14, 0
    %p87 = por %p85, %p86
    %p88 = scmp.ne.s32.totalorder %s74, %s75
    %p89 = scmp.eq.s32.totalorder %s15, 1
    %p90 = por %p88, %p89
    %p92 = scmp.ne.s32.totalorder %s75, %s91
    %p93 = scmp.eq.s32.totalorder %s15, 0
    %p94 = por %p92, %p93
    %s95 = ssub.s32 %s9, %s16
    %p96 = scmp.eq.s32.totalorder %s95, 0
    %s98 = sadd.s32 %s97, 1
    %s99 = scalar_select %p96, %s97, %s98
    %p102 = pneg %p96
    %p103 = scmp.eq.s32.totalorder %s9, 1
    %p104 = por %p102, %p103
    %p105 = scmp.ne.s32.totalorder %s97, %s100
    %p106 = scmp.eq.s32.totalorder %s9, 0
    %p107 = por %p105, %p106
    %p108 = scmp.ne.s32.totalorder %s97, %s100
    %p109 = scmp.eq.s32.totalorder %s14, 1
    %p110 = por %p108, %p109
    %p111 = scmp.ne.s32.totalorder %s100, %s101
    %p112 = scmp.eq.s32.totalorder %s14, 0
    %p113 = por %p111, %p112
    %p114 = scmp.ne.s32.totalorder %s100, %s101
    %p115 = scmp.eq.s32.totalorder %s15, 1
    %p116 = por %p114, %p115
    %p118 = scmp.ne.s32.totalorder %s101, %s117
    %p119 = scmp.eq.s32.totalorder %s15, 0
    %p120 = por %p118, %p119
    %p121 = scmp.le.s32.totalorder 1, %s9
    %p122 = scmp.lt.s32.totalorder %s9, 3
    %p123 = pnand %p121, %p122
    %p124 = pneg %p123
    // Predicated region
    $region9: #{tpu_custom_call.1} parent=5 // pred_check
      _
    $region10: #{tpu_custom_call.1} parent=5 // pred_check_branch
      %126 = sbr.rel (%p123) target = $region12
    $region11: #{tpu_custom_call.1} parent=5 // pred_region
      %s127 = ssub.s32 %s9, 1
    $region12: #{tpu_custom_call.1} parent=5 // pred_fallthru
      _
    %p128 = scmp.lt.s32.totalorder %s9, 2
    // Predicated region
    $region13: #{tpu_custom_call.1} parent=5 // pred_check
      %p129 = pneg %p128
    $region14: #{tpu_custom_call.1} parent=5 // pred_check_branch
      %131 = sbr.rel (%p129) target = $region16
    $region15: #{tpu_custom_call.1} parent=5 // pred_region
      // Predicated region
      $region17: #{tpu_custom_call.1} parent=15 // pred_check
        %p132 = pneg %p29
      $region18: #{tpu_custom_call.1} parent=15 // pred_check_branch
        %134 = sbr.rel (%p132) target = $region20
      $region19: #{tpu_custom_call.1} parent=15 // pred_region
        %s135 = smul.u32 112, %s9
        %p136 = scmp.lt.s32.totalorder %s135, 223
        %s137 = scalar_select %p136, %s135, 223
        %s138 = smul.addr %s137, 8
        %s139 = scalar_lea.vmem %s0, %s138
        %s140 = smul.u32 112, %s9
      $region20: #{tpu_custom_call.1} parent=15 // pred_fallthru
        _
      // Predicated region
      $region21: #{tpu_custom_call.1} parent=15 // pred_check
        %p141 = pneg %p55
      $region22: #{tpu_custom_call.1} parent=15 // pred_check_branch
        %143 = sbr.rel (%p141) target = $region24
      $region23: #{tpu_custom_call.1} parent=15 // pred_region
        %s144 = smul.u32 112, %s9
        %p145 = scmp.lt.s32.totalorder %s144, 223
        %s146 = scalar_select %p145, %s144, 223
        %s147 = smul.addr %s146, 8
        %s148 = scalar_lea.vmem %s1, %s147
        %s149 = smul.u32 112, %s9
      $region24: #{tpu_custom_call.1} parent=15 // pred_fallthru
        _
      // Predicated region
      $region25: #{tpu_custom_call.1} parent=15 // pred_check
        %p150 = pneg %p81
      $region26: #{tpu_custom_call.1} parent=15 // pred_check_branch
        %152 = sbr.rel (%p150) target = $region28
      $region27: #{tpu_custom_call.1} parent=15 // pred_region
        %s153 = smul.u32 112, %s9
        %p154 = scmp.lt.s32.totalorder %s153, 223
        %s155 = scalar_select %p154, %s153, 223
        %s156 = smul.addr %s155, 8
        %s157 = scalar_lea.vmem %s2, %s156
        %s158 = smul.u32 112, %s9
      $region28: #{tpu_custom_call.1} parent=15 // pred_fallthru
        _
    $region16: #{tpu_custom_call.1} parent=5 // pred_fallthru
      _
    %p159 = scmp.le.s32.totalorder 1, %s9
    %p160 = scmp.lt.s32.totalorder %s9, 3
    %p161 = pnand %p159, %p160
    %p162 = pneg %p161
    // Predicated region
    $region29: #{tpu_custom_call.1} parent=5 // pred_check
      _
    $region30: #{tpu_custom_call.1} parent=5 // pred_check_branch
      %164 = sbr.rel (%p161) target = $region32
    $region31: #{tpu_custom_call.1} parent=5 // pred_region
      %s165 = ssub.s32 %s9, 1
      %s166 = smul.u32 112, %s14
      %p167 = scmp.lt.s32.totalorder %s166, 223
      %s168 = scalar_select %p167, %s166, 223
      %s169 = smul.addr %s168, 8
      %s170 = scalar_lea.vmem %s0, %s169
      %p171 = pneg %p35
      %p172 = pneg %p32
      %s173 = smul.u32 112, %s14
      %p174 = scmp.lt.s32.totalorder %s173, 223
      %s175 = scalar_select %p174, %s173, 223
      %s176 = smul.addr %s175, 8
      %s177 = scalar_lea.vmem %s1, %s176
      %p178 = pneg %p61
      %p179 = pneg %p58
      %s180 = smul.u32 112, %s14
      %p181 = scmp.lt.s32.totalorder %s180, 223
      %s182 = scalar_select %p181, %s180, 223
      %s183 = smul.addr %s182, 8
      %s184 = scalar_lea.vmem %s2, %s183
      %p185 = pneg %p87
      %p186 = pneg %p84
      %p187 = pneg %p113
      %p188 = pneg %p110
      %s189 = smul.u32 112, %s14
      %p190 = scmp.lt.s32.totalorder %s189, 223
      %s191 = scalar_select %p190, %s189, 223
      %s192 = smul.addr %s191, 8
      %s193 = scalar_lea.vmem %s3, %s192
      %s194 = smul.u32 112, %s14
      %p195 = scmp.lt.s32.totalorder %s194, 223
      %s196 = scalar_select %p195, %s194, 223
      %s197 = smul.addr %s196, 8
      %s198 = scalar_lea.vmem %s0, %s197
      %s199 = smul.u32 112, %s14
      %s200 = smul.u32 112, %s14
      %p201 = scmp.lt.s32.totalorder %s200, 223
      %s202 = scalar_select %p201, %s200, 223
      %s203 = smul.addr %s202, 8
      %s204 = scalar_lea.vmem %s1, %s203
      %s205 = smul.u32 112, %s14
      %s206 = smul.u32 112, %s14
      %p207 = scmp.lt.s32.totalorder %s206, 223
      %s208 = scalar_select %p207, %s206, 223
      %s209 = smul.addr %s208, 8
      %s210 = scalar_lea.vmem %s2, %s209
      %s211 = smul.u32 112, %s14
      %s212 = smul.u32 112, %s14
      %p213 = scmp.lt.s32.totalorder %s212, 223
      %s214 = scalar_select %p213, %s212, 223
      %s215 = smul.addr %s214, 8
      %s216 = scalar_lea.vmem %s3, %s215
      %s217 = smul.u32 112, %s14
      loop: start=0, step=1, limit=7
      $region33: #{tpu_custom_call.1} parent=31 // loop_pre_header
        _
      $region34: #{tpu_custom_call.1} parent=31 // loop_header
        %s219 = sphi 0, %s223
        %p220 = scmp.ge.s32.totalorder %s219, 7
      $region35: #{tpu_custom_call.1} parent=31 // loop_header_branch
        %222 = sbr.rel (%p220) target = $region39
      $region36: #{tpu_custom_call.1} parent=31 // loop_body
        %s224 = smul.u32 %s219, 128
        %s225 = scalar_lea.vmem %s198, %s224
        %v226 = vld [vmem:[%s225] sm:$0xff]
        %v227 = vld [vmem:[%s225 + $0x8] sm:$0xff]
        %v228 = vld [vmem:[%s225 + $0x10] sm:$0xff]
        %v229 = vld [vmem:[%s225 + $0x18] sm:$0xff]
        %v230 = vld [vmem:[%s225 + $0x20] sm:$0xff]
        %v231 = vld [vmem:[%s225 + $0x28] sm:$0xff]
        %v232 = vld [vmem:[%s225 + $0x30] sm:$0xff]
        %v233 = vld [vmem:[%s225 + $0x38] sm:$0xff]
        %v234 = vld [vmem:[%s225 + $0x40] sm:$0xff]
        %v235 = vld [vmem:[%s225 + $0x48] sm:$0xff]
        %v236 = vld [vmem:[%s225 + $0x50] sm:$0xff]
        %v237 = vld [vmem:[%s225 + $0x58] sm:$0xff]
        %v238 = vld [vmem:[%s225 + $0x60] sm:$0xff]
        %v239 = vld [vmem:[%s225 + $0x68] sm:$0xff]
        %v240 = vld [vmem:[%s225 + $0x70] sm:$0xff]
        %v241 = vld [vmem:[%s225 + $0x78] sm:$0xff]
        %vm242 = vcmask 400384
        %v243 = vsel %vm242, %v226, 0.0
        %244 = vadd.xlane.f32.xlu0 %v243
        %v245 = vpop.xlane.xlu0 %244
        %v246 = vsel %vm242, %v227, 0.0
        %247 = vadd.xlane.f32.xlu0 %v246
        %v248 = vpop.xlane.xlu0 %247
        %v249 = vsel %vm242, %v228, 0.0
        %250 = vadd.xlane.f32.xlu0 %v249
        %v251 = vpop.xlane.xlu0 %250
        %v252 = vsel %vm242, %v229, 0.0
        %253 = vadd.xlane.f32.xlu0 %v252
        %v254 = vpop.xlane.xlu0 %253
        %v255 = vsel %vm242, %v230, 0.0
        %256 = vadd.xlane.f32.xlu0 %v255
        %v257 = vpop.xlane.xlu0 %256
        %v258 = vsel %vm242, %v231, 0.0
        %259 = vadd.xlane.f32.xlu0 %v258
        %v260 = vpop.xlane.xlu0 %259
        %v261 = vsel %vm242, %v232, 0.0
        %262 = vadd.xlane.f32.xlu0 %v261
        %v263 = vpop.xlane.xlu0 %262
        %v264 = vsel %vm242, %v233, 0.0
        %265 = vadd.xlane.f32.xlu0 %v264
        %v266 = vpop.xlane.xlu0 %265
        %v267 = vsel %vm242, %v234, 0.0
        %268 = vadd.xlane.f32.xlu0 %v267
        %v269 = vpop.xlane.xlu0 %268
        %v270 = vsel %vm242, %v235, 0.0
        %271 = vadd.xlane.f32.xlu0 %v270
        %v272 = vpop.xlane.xlu0 %271
        %v273 = vsel %vm242, %v236, 0.0
        %274 = vadd.xlane.f32.xlu0 %v273
        %v275 = vpop.xlane.xlu0 %274
        %v276 = vsel %vm242, %v237, 0.0
        %277 = vadd.xlane.f32.xlu0 %v276
        %v278 = vpop.xlane.xlu0 %277
        %v279 = vsel %vm242, %v238, 0.0
        %280 = vadd.xlane.f32.xlu0 %v279
        %v281 = vpop.xlane.xlu0 %280
        %v282 = vsel %vm242, %v239, 0.0
        %283 = vadd.xlane.f32.xlu0 %v282
        %v284 = vpop.xlane.xlu0 %283
        %v285 = vsel %vm242, %v240, 0.0
        %286 = vadd.xlane.f32.xlu0 %v285
        %v287 = vpop.xlane.xlu0 %286
        %v288 = vsel %vm242, %v241, 0.0
        %289 = vadd.xlane.f32.xlu0 %v288
        %v290 = vpop.xlane.xlu0 %289
        %v291 = vmul.f32 %v245, 0.020408163
        %v292 = vmul.f32 %v248, 0.020408163
        %v293 = vmul.f32 %v251, 0.020408163
        %v294 = vmul.f32 %v254, 0.020408163
        %v295 = vmul.f32 %v257, 0.020408163
        %v296 = vmul.f32 %v260, 0.020408163
        %v297 = vmul.f32 %v263, 0.020408163
        %v298 = vmul.f32 %v266, 0.020408163
        %v299 = vmul.f32 %v269, 0.020408163
        %v300 = vmul.f32 %v272, 0.020408163
        %v301 = vmul.f32 %v275, 0.020408163
        %v302 = vmul.f32 %v278, 0.020408163
        %v303 = vmul.f32 %v281, 0.020408163
        %v304 = vmul.f32 %v284, 0.020408163
        %v305 = vmul.f32 %v287, 0.020408163
        %v306 = vmul.f32 %v290, 0.020408163
        %v307 = vsub.f32 %v226, %v291
        %v308 = vsub.f32 %v227, %v292
        %v309 = vsub.f32 %v228, %v293
        %v310 = vsub.f32 %v229, %v294
        %v311 = vsub.f32 %v230, %v295
        %v312 = vsub.f32 %v231, %v296
        %v313 = vsub.f32 %v232, %v297
        %v314 = vsub.f32 %v233, %v298
        %v315 = vsub.f32 %v234, %v299
        %v316 = vsub.f32 %v235, %v300
        %v317 = vsub.f32 %v236, %v301
        %v318 = vsub.f32 %v237, %v302
        %v319 = vsub.f32 %v238, %v303
        %v320 = vsub.f32 %v239, %v304
        %v321 = vsub.f32 %v240, %v305
        %v322 = vsub.f32 %v241, %v306
        %v323 = vmul.f32 %v307, %v307
        %v324 = vmul.f32 %v308, %v308
        %v325 = vmul.f32 %v309, %v309
        %v326 = vmul.f32 %v310, %v310
        %v327 = vmul.f32 %v311, %v311
        %v328 = vmul.f32 %v312, %v312
        %v329 = vmul.f32 %v313, %v313
        %v330 = vmul.f32 %v314, %v314
        %v331 = vmul.f32 %v315, %v315
        %v332 = vmul.f32 %v316, %v316
        %v333 = vmul.f32 %v317, %v317
        %v334 = vmul.f32 %v318, %v318
        %v335 = vmul.f32 %v319, %v319
        %v336 = vmul.f32 %v320, %v320
        %v337 = vmul.f32 %v321, %v321
        %v338 = vmul.f32 %v322, %v322
        %v339 = vsel %vm242, %v323, 0.0
        %340 = vadd.xlane.f32.xlu0 %v339
        %v341 = vpop.xlane.xlu0 %340
        %v342 = vsel %vm242, %v324, 0.0
        %343 = vadd.xlane.f32.xlu0 %v342
        %v344 = vpop.xlane.xlu0 %343
        %v345 = vsel %vm242, %v325, 0.0
        %346 = vadd.xlane.f32.xlu0 %v345
        %v347 = vpop.xlane.xlu0 %346
        %v348 = vsel %vm242, %v326, 0.0
        %349 = vadd.xlane.f32.xlu0 %v348
        %v350 = vpop.xlane.xlu0 %349
        %v351 = vsel %vm242, %v327, 0.0
        %352 = vadd.xlane.f32.xlu0 %v351
        %v353 = vpop.xlane.xlu0 %352
        %v354 = vsel %vm242, %v328, 0.0
        %355 = vadd.xlane.f32.xlu0 %v354
        %v356 = vpop.xlane.xlu0 %355
        %v357 = vsel %vm242, %v329, 0.0
        %358 = vadd.xlane.f32.xlu0 %v357
        %v359 = vpop.xlane.xlu0 %358
        %v360 = vsel %vm242, %v330, 0.0
        %361 = vadd.xlane.f32.xlu0 %v360
        %v362 = vpop.xlane.xlu0 %361
        %v363 = vsel %vm242, %v331, 0.0
        %364 = vadd.xlane.f32.xlu0 %v363
        %v365 = vpop.xlane.xlu0 %364
        %v366 = vsel %vm242, %v332, 0.0
        %367 = vadd.xlane.f32.xlu0 %v366
        %v368 = vpop.xlane.xlu0 %367
        %v369 = vsel %vm242, %v333, 0.0
        %370 = vadd.xlane.f32.xlu0 %v369
        %v371 = vpop.xlane.xlu0 %370
        %v372 = vsel %vm242, %v334, 0.0
        %373 = vadd.xlane.f32.xlu0 %v372
        %v374 = vpop.xlane.xlu0 %373
        %v375 = vsel %vm242, %v335, 0.0
        %376 = vadd.xlane.f32.xlu0 %v375
        %v377 = vpop.xlane.xlu0 %376
        %v378 = vsel %vm242, %v336, 0.0
        %379 = vadd.xlane.f32.xlu0 %v378
        %v380 = vpop.xlane.xlu0 %379
        %v381 = vsel %vm242, %v337, 0.0
        %382 = vadd.xlane.f32.xlu0 %v381
        %v383 = vpop.xlane.xlu0 %382
        %v384 = vsel %vm242, %v338, 0.0
        %385 = vadd.xlane.f32.xlu0 %v384
        %v386 = vpop.xlane.xlu0 %385
        %v387 = vmul.f32 %v341, 0.020408163
        %v388 = vmul.f32 %v344, 0.020408163
        %v389 = vmul.f32 %v347, 0.020408163
        %v390 = vmul.f32 %v350, 0.020408163
        %v391 = vmul.f32 %v353, 0.020408163
        %v392 = vmul.f32 %v356, 0.020408163
        %v393 = vmul.f32 %v359, 0.020408163
        %v394 = vmul.f32 %v362, 0.020408163
        %v395 = vmul.f32 %v365, 0.020408163
        %v396 = vmul.f32 %v368, 0.020408163
        %v397 = vmul.f32 %v371, 0.020408163
        %v398 = vmul.f32 %v374, 0.020408163
        %v399 = vmul.f32 %v377, 0.020408163
        %v400 = vmul.f32 %v380, 0.020408163
        %v401 = vmul.f32 %v383, 0.020408163
        %v402 = vmul.f32 %v386, 0.020408163
        %s403 = scalar_lea.vmem %s204, %s224
        %v404 = vld [vmem:[%s403] sm:$0xff]
        %v405 = vld [vmem:[%s403 + $0x8] sm:$0xff]
        %v406 = vld [vmem:[%s403 + $0x10] sm:$0xff]
        %v407 = vld [vmem:[%s403 + $0x18] sm:$0xff]
        %v408 = vld [vmem:[%s403 + $0x20] sm:$0xff]
        %v409 = vld [vmem:[%s403 + $0x28] sm:$0xff]
        %v410 = vld [vmem:[%s403 + $0x30] sm:$0xff]
        %v411 = vld [vmem:[%s403 + $0x38] sm:$0xff]
        %v412 = vld [vmem:[%s403 + $0x40] sm:$0xff]
        %v413 = vld [vmem:[%s403 + $0x48] sm:$0xff]
        %v414 = vld [vmem:[%s403 + $0x50] sm:$0xff]
        %v415 = vld [vmem:[%s403 + $0x58] sm:$0xff]
        %v416 = vld [vmem:[%s403 + $0x60] sm:$0xff]
        %v417 = vld [vmem:[%s403 + $0x68] sm:$0xff]
        %v418 = vld [vmem:[%s403 + $0x70] sm:$0xff]
        %v419 = vld [vmem:[%s403 + $0x78] sm:$0xff]
        %v420 = vadd.f32 %v387, 1e-05
        %v421 = vadd.f32 %v388, 1e-05
        %v422 = vadd.f32 %v389, 1e-05
        %v423 = vadd.f32 %v390, 1e-05
        %v424 = vadd.f32 %v391, 1e-05
        %v425 = vadd.f32 %v392, 1e-05
        %v426 = vadd.f32 %v393, 1e-05
        %v427 = vadd.f32 %v394, 1e-05
        %v428 = vadd.f32 %v395, 1e-05
        %v429 = vadd.f32 %v396, 1e-05
        %v430 = vadd.f32 %v397, 1e-05
        %v431 = vadd.f32 %v398, 1e-05
        %v432 = vadd.f32 %v399, 1e-05
        %v433 = vadd.f32 %v400, 1e-05
        %v434 = vadd.f32 %v401, 1e-05
        %v435 = vadd.f32 %v402, 1e-05
        %v436 = vrsqrt.pop %v420
        %v437 = vrsqrt.pop %v421
        %v438 = vrsqrt.pop %v422
        %v439 = vrsqrt.pop %v423
        %v440 = vrsqrt.pop %v424
        %v441 = vrsqrt.pop %v425
        %v442 = vrsqrt.pop %v426
        %v443 = vrsqrt.pop %v427
        %v444 = vrsqrt.pop %v428
        %v445 = vrsqrt.pop %v429
        %v446 = vrsqrt.pop %v430
        %v447 = vrsqrt.pop %v431
        %v448 = vrsqrt.pop %v432
        %v449 = vrsqrt.pop %v433
        %v450 = vrsqrt.pop %v434
        %v451 = vrsqrt.pop %v435
        %v452 = vmul.f32 %v404, %v436
        %v453 = vmul.f32 %v405, %v437
        %v454 = vmul.f32 %v406, %v438
        %v455 = vmul.f32 %v407, %v439
        %v456 = vmul.f32 %v408, %v440
        %v457 = vmul.f32 %v409, %v441
        %v458 = vmul.f32 %v410, %v442
        %v459 = vmul.f32 %v411, %v443
        %v460 = vmul.f32 %v412, %v444
        %v461 = vmul.f32 %v413, %v445
        %v462 = vmul.f32 %v414, %v446
        %v463 = vmul.f32 %v415, %v447
        %v464 = vmul.f32 %v416, %v448
        %v465 = vmul.f32 %v417, %v449
        %v466 = vmul.f32 %v418, %v450
        %v467 = vmul.f32 %v419, %v451
        %469 = vset.pattern.permute.xlu0 0
        %470 = vperm.xlu0 %469, %v452
        %v471 = vpop.permute.xlu0 %470
        %474 = vset.pattern.permute.xlu0 0
        %475 = vperm.xlu0 %474, %v453
        %v476 = vpop.permute.xlu0 %475
        %479 = vset.pattern.permute.xlu0 0
        %480 = vperm.xlu0 %479, %v454
        %v481 = vpop.permute.xlu0 %480
        %484 = vset.pattern.permute.xlu0 0
        %485 = vperm.xlu0 %484, %v455
        %v486 = vpop.permute.xlu0 %485
        %489 = vset.pattern.permute.xlu0 0
        %490 = vperm.xlu0 %489, %v456
        %v491 = vpop.permute.xlu0 %490
        %494 = vset.pattern.permute.xlu0 0
        %495 = vperm.xlu0 %494, %v457
        %v496 = vpop.permute.xlu0 %495
        %499 = vset.pattern.permute.xlu0 0
        %500 = vperm.xlu0 %499, %v458
        %v501 = vpop.permute.xlu0 %500
        %504 = vset.pattern.permute.xlu0 0
        %505 = vperm.xlu0 %504, %v459
        %v506 = vpop.permute.xlu0 %505
        %509 = vset.pattern.permute.xlu0 0
        %510 = vperm.xlu0 %509, %v460
        %v511 = vpop.permute.xlu0 %510
        %514 = vset.pattern.permute.xlu0 0
        %515 = vperm.xlu0 %514, %v461
        %v516 = vpop.permute.xlu0 %515
        %519 = vset.pattern.permute.xlu0 0
        %520 = vperm.xlu0 %519, %v462
        %v521 = vpop.permute.xlu0 %520
        %524 = vset.pattern.permute.xlu0 0
        %525 = vperm.xlu0 %524, %v463
        %v526 = vpop.permute.xlu0 %525
        %529 = vset.pattern.permute.xlu0 0
        %530 = vperm.xlu0 %529, %v464
        %v531 = vpop.permute.xlu0 %530
        %534 = vset.pattern.permute.xlu0 0
        %535 = vperm.xlu0 %534, %v465
        %v536 = vpop.permute.xlu0 %535
        %539 = vset.pattern.permute.xlu0 0
        %540 = vperm.xlu0 %539, %v466
        %v541 = vpop.permute.xlu0 %540
        %544 = vset.pattern.permute.xlu0 0
        %545 = vperm.xlu0 %544, %v467
        %v546 = vpop.permute.xlu0 %545
        %v548 = vmul.f32 %v307, %v471
        %v549 = vmul.f32 %v308, %v476
        %v550 = vmul.f32 %v309, %v481
        %v551 = vmul.f32 %v310, %v486
        %v552 = vmul.f32 %v311, %v491
        %v553 = vmul.f32 %v312, %v496
        %v554 = vmul.f32 %v313, %v501
        %v555 = vmul.f32 %v314, %v506
        %v556 = vmul.f32 %v315, %v511
        %v557 = vmul.f32 %v316, %v516
        %v558 = vmul.f32 %v317, %v521
        %v559 = vmul.f32 %v318, %v526
        %v560 = vmul.f32 %v319, %v531
        %v561 = vmul.f32 %v320, %v536
        %v562 = vmul.f32 %v321, %v541
        %v563 = vmul.f32 %v322, %v546
        %s564 = scalar_lea.vmem %s210, %s224
        %v565 = vld [vmem:[%s564] sm:$0xff]
        %v566 = vld [vmem:[%s564 + $0x8] sm:$0xff]
        %v567 = vld [vmem:[%s564 + $0x10] sm:$0xff]
        %v568 = vld [vmem:[%s564 + $0x18] sm:$0xff]
        %v569 = vld [vmem:[%s564 + $0x20] sm:$0xff]
        %v570 = vld [vmem:[%s564 + $0x28] sm:$0xff]
        %v571 = vld [vmem:[%s564 + $0x30] sm:$0xff]
        %v572 = vld [vmem:[%s564 + $0x38] sm:$0xff]
        %v573 = vld [vmem:[%s564 + $0x40] sm:$0xff]
        %v574 = vld [vmem:[%s564 + $0x48] sm:$0xff]
        %v575 = vld [vmem:[%s564 + $0x50] sm:$0xff]
        %v576 = vld [vmem:[%s564 + $0x58] sm:$0xff]
        %v577 = vld [vmem:[%s564 + $0x60] sm:$0xff]
        %v578 = vld [vmem:[%s564 + $0x68] sm:$0xff]
        %v579 = vld [vmem:[%s564 + $0x70] sm:$0xff]
        %v580 = vld [vmem:[%s564 + $0x78] sm:$0xff]
        %582 = vset.pattern.permute.xlu0 0
        %583 = vperm.xlu0 %582, %v565
        %v584 = vpop.permute.xlu0 %583
        %587 = vset.pattern.permute.xlu0 0
        %588 = vperm.xlu0 %587, %v566
        %v589 = vpop.permute.xlu0 %588
        %592 = vset.pattern.permute.xlu0 0
        %593 = vperm.xlu0 %592, %v567
        %v594 = vpop.permute.xlu0 %593
        %597 = vset.pattern.permute.xlu0 0
        %598 = vperm.xlu0 %597, %v568
        %v599 = vpop.permute.xlu0 %598
        %602 = vset.pattern.permute.xlu0 0
        %603 = vperm.xlu0 %602, %v569
        %v604 = vpop.permute.xlu0 %603
        %607 = vset.pattern.permute.xlu0 0
        %608 = vperm.xlu0 %607, %v570
        %v609 = vpop.permute.xlu0 %608
        %612 = vset.pattern.permute.xlu0 0
        %613 = vperm.xlu0 %612, %v571
        %v614 = vpop.permute.xlu0 %613
        %617 = vset.pattern.permute.xlu0 0
        %618 = vperm.xlu0 %617, %v572
        %v619 = vpop.permute.xlu0 %618
        %622 = vset.pattern.permute.xlu0 0
        %623 = vperm.xlu0 %622, %v573
        %v624 = vpop.permute.xlu0 %623
        %627 = vset.pattern.permute.xlu0 0
        %628 = vperm.xlu0 %627, %v574
        %v629 = vpop.permute.xlu0 %628
        %632 = vset.pattern.permute.xlu0 0
        %633 = vperm.xlu0 %632, %v575
        %v634 = vpop.permute.xlu0 %633
        %637 = vset.pattern.permute.xlu0 0
        %638 = vperm.xlu0 %637, %v576
        %v639 = vpop.permute.xlu0 %638
        %642 = vset.pattern.permute.xlu0 0
        %643 = vperm.xlu0 %642, %v577
        %v644 = vpop.permute.xlu0 %643
        %647 = vset.pattern.permute.xlu0 0
        %648 = vperm.xlu0 %647, %v578
        %v649 = vpop.permute.xlu0 %648
        %652 = vset.pattern.permute.xlu0 0
        %653 = vperm.xlu0 %652, %v579
        %v654 = vpop.permute.xlu0 %653
        %657 = vset.pattern.permute.xlu0 0
        %658 = vperm.xlu0 %657, %v580
        %v659 = vpop.permute.xlu0 %658
        %v661 = vadd.f32 %v548, %v584
        %v662 = vadd.f32 %v549, %v589
        %v663 = vadd.f32 %v550, %v594
        %v664 = vadd.f32 %v551, %v599
        %v665 = vadd.f32 %v552, %v604
        %v666 = vadd.f32 %v553, %v609
        %v667 = vadd.f32 %v554, %v614
        %v668 = vadd.f32 %v555, %v619
        %v669 = vadd.f32 %v556, %v624
        %v670 = vadd.f32 %v557, %v629
        %v671 = vadd.f32 %v558, %v634
        %v672 = vadd.f32 %v559, %v639
        %v673 = vadd.f32 %v560, %v644
        %v674 = vadd.f32 %v561, %v649
        %v675 = vadd.f32 %v562, %v654
        %v676 = vadd.f32 %v563, %v659
        %s677 = scalar_lea.vmem %s216, %s224
        %678 = vst.msk [vmem:[%s677] sm:$0xff] %vm242, %v661
        %679 = vst.msk [vmem:[%s677 + $0x8] sm:$0xff] %vm242, %v662
        %680 = vst.msk [vmem:[%s677 + $0x10] sm:$0xff] %vm242, %v663
        %681 = vst.msk [vmem:[%s677 + $0x18] sm:$0xff] %vm242, %v664
        %682 = vst.msk [vmem:[%s677 + $0x20] sm:$0xff] %vm242, %v665
        %683 = vst.msk [vmem:[%s677 + $0x28] sm:$0xff] %vm242, %v666
        %684 = vst.msk [vmem:[%s677 + $0x30] sm:$0xff] %vm242, %v667
        %685 = vst.msk [vmem:[%s677 + $0x38] sm:$0xff] %vm242, %v668
        %686 = vst.msk [vmem:[%s677 + $0x40] sm:$0xff] %vm242, %v669
        %687 = vst.msk [vmem:[%s677 + $0x48] sm:$0xff] %vm242, %v670
        %688 = vst.msk [vmem:[%s677 + $0x50] sm:$0xff] %vm242, %v671
        %689 = vst.msk [vmem:[%s677 + $0x58] sm:$0xff] %vm242, %v672
        %690 = vst.msk [vmem:[%s677 + $0x60] sm:$0xff] %vm242, %v673
        %691 = vst.msk [vmem:[%s677 + $0x68] sm:$0xff] %vm242, %v674
        %692 = vst.msk [vmem:[%s677 + $0x70] sm:$0xff] %vm242, %v675
        %693 = vst.msk [vmem:[%s677 + $0x78] sm:$0xff] %vm242, %v676
      $region37: #{tpu_custom_call.1} parent=31 // loop_footer
        %s223 = sadd.s32 1, %s219
      $region38: #{tpu_custom_call.1} parent=31 // loop_footer_branch
        %218 = sbr.rel target = $region34
      $region39: #{tpu_custom_call.1} parent=31 // loop_exit
        _
      %s694 = smul.u32 112, %s14
      %p695 = scmp.lt.s32.totalorder %s694, 223
      %s696 = scalar_select %p695, %s694, 223
      %s697 = smul.addr %s696, 8
      %s698 = scalar_lea.vmem %s3, %s697
      // Predicated region
      $region40: #{tpu_custom_call.1} parent=31 // pred_check
        %p699 = pneg %p110
      $region41: #{tpu_custom_call.1} parent=31 // pred_check_branch
        %701 = sbr.rel (%p699) target = $region43
      $region42: #{tpu_custom_call.1} parent=31 // pred_region
        %s702 = smul.u32 112, %s14
      $region43: #{tpu_custom_call.1} parent=31 // pred_fallthru
        _
    $region32: #{tpu_custom_call.1} parent=5 // pred_fallthru
      _
    %p703 = scmp.le.s32.totalorder 2, %s9
    // Predicated region
    $region44: #{tpu_custom_call.1} parent=5 // pred_check
      %p704 = pneg %p703
    $region45: #{tpu_custom_call.1} parent=5 // pred_check_branch
      %706 = sbr.rel (%p704) target = $region47
    $region46: #{tpu_custom_call.1} parent=5 // pred_region
      %s707 = ssub.s32 %s9, 2
      // Predicated region
      $region48: #{tpu_custom_call.1} parent=46 // pred_check
        %p708 = pneg %p116
      $region49: #{tpu_custom_call.1} parent=46 // pred_check_branch
        %710 = sbr.rel (%p708) target = $region51
      $region50: #{tpu_custom_call.1} parent=46 // pred_region
        %s711 = smul.u32 112, %s15
        %p712 = scmp.lt.s32.totalorder %s711, 223
        %s713 = scalar_select %p712, %s711, 223
        %s714 = smul.addr %s713, 8
        %s715 = scalar_lea.vmem %s3, %s714
      $region51: #{tpu_custom_call.1} parent=46 // pred_fallthru
        _
    $region47: #{tpu_custom_call.1} parent=5 // pred_fallthru
      _
  $region6: #{tpu_custom_call.1} parent=0 // loop_footer
    %s13 = sadd.s32 1, %s9
  $region7: #{tpu_custom_call.1} parent=0 // loop_footer_branch
    %8 = sbr.rel target = $region3
  $region8: #{tpu_custom_call.1} parent=0 // loop_exit
    _

</llo_original>
